<compile_context>
chip_gen: v7x
topology: tpu7x:2x2x1
jax: 0.10.0
libtpu: 0.0.40
codegen_flags: <defaults>
</compile_context>

<pallas_src>
import functools

import jax
import jax.numpy as jnp
from jax.experimental import pallas as pl
from jax.experimental.pallas import tpu as pltpu


def _round_up(x, m):
    return ((x + m - 1) // m) * m


def _cdiv(a, b):
    return -(-a // b)


def _skip_block_kernel(x_ref, w_ref, b_ref, o_ref, *, num_layers, activation):
    """out-tile = x-tile + MLP(x-tile), in the module's native (batch, feature) layout.

    x_ref: (TB, N)    activation tile: batch on sublanes, feature on lanes
    w_ref: (L, N, N)  stacked weights, layout such that y = x @ W[l] + b[l]
    b_ref: (L, 1, N)  stacked biases (broadcast over the batch rows)
    o_ref: (TB, N)    output tile
    """
    x = x_ref[...]                      # (TB, N) f32
    h = x
    for l in range(num_layers):         # static, unrolled layer loop
        # MXU matmul with f32 accumulation + per-feature bias broadcast.
        h = jnp.dot(h, w_ref[l], preferred_element_type=jnp.float32) + b_ref[l]
        if activation == "relu":
            h = jnp.maximum(h, 0.0)
        elif activation == "lrelu":
            # torch.nn.LeakyReLU(0.3): mul+max instead of cmp+mul+select.
            h = jnp.maximum(h, 0.3 * h)
        else:
            raise ValueError(f"unsupported activation: {activation}")
    o_ref[...] = (x + h).astype(o_ref.dtype)    # residual / skip connection


def _choose_tb(batch, tb_max):
    """Pick the batch tile: big tiles for large B, >=4 grid steps when possible."""
    tb_max = max(128, (int(tb_max) // 128) * 128)
    if batch <= 128:
        # Single block equal to the full batch extent (allowed by the
        # (8, 128)-or-full-dim rule since it spans the whole array dim).
        return batch
    # Aim for >= 4 grid steps so v7x's two TensorCores each get >= 2 steps,
    # but never drop below one full 128-lane row and never exceed tb_max.
    target = _round_up(_cdiv(batch, 4), 128)
    return min(tb_max, max(128, target))


def regressor_nn_skip_part(x, weights, biases, *, activation="relu",
                           regularization=None, tb=8192):
    """Forward of RegressorNNSkipPart.

    x:       (B, N)     f32 activations (feature-last, like the torch module)
    weights: (L, N, N)  per-layer Linear weights, layout so y = x @ W[l] + b[l]
                        (i.e. torch_linear.weight.T per layer)
    biases:  (L, 1, N)  per-layer Linear biases
    """
    if regularization not in (None, "dropout"):
        # TODO(synk): batchnorm running-stats path not implemented in-kernel.
        raise NotImplementedError(
            "Only regularization=None / eval-mode dropout (identity) supported")

    B, N = x.shape
    L = weights.shape[0]

    tb_eff = _choose_tb(B, tb)
    grid = (_cdiv(B, tb_eff),)

    kernel = functools.partial(
        _skip_block_kernel, num_layers=L, activation=activation
    )

    return pl.pallas_call(
        kernel,
        out_shape=jax.ShapeDtypeStruct((B, N), x.dtype),
        grid_spec=pltpu.PrefetchScalarGridSpec(
            num_scalar_prefetch=0,
            grid=grid,
            in_specs=[
                # activation tile: streamed / double-buffered along the batch axis
                pl.BlockSpec((tb_eff, N), lambda i: (i, 0)),
                # stacked weights: constant block index -> VMEM-resident, no re-DMA
                pl.BlockSpec((L, N, N), lambda i: (0, 0, 0)),
                # stacked biases: constant block index -> VMEM-resident, no re-DMA
                pl.BlockSpec((L, 1, N), lambda i: (0, 0, 0)),
            ],
            out_specs=pl.BlockSpec((tb_eff, N), lambda i: (i, 0)),
        ),
        compiler_params=pltpu.CompilerParams(
            dimension_semantics=("parallel",),      # shards batch axis across TCs on v7x
        ),
    )(x, weights, biases)


def _init_params(key, num_layers, neurons, dtype=jnp.float32):
    """Deterministic init matching torch.nn.Linear default U[-1/sqrt(fan_in), +...]."""
    kw, kb = jax.random.split(key)
    bound = 1.0 / jnp.sqrt(jnp.asarray(neurons, dtype))
    weights = jax.random.uniform(
        kw, (num_layers, neurons, neurons), dtype, minval=-bound, maxval=bound
    )
    biases = jax.random.uniform(
        kb, (num_layers, 1, neurons), dtype, minval=-bound, maxval=bound
    )
    return weights, biases


def _reference(x, weights, biases, activation="relu"):
    h = x
    for l in range(weights.shape[0]):
        h = h @ weights[l] + biases[l]
        if activation == "relu":
            h = jnp.maximum(h, 0.0)
        elif activation == "lrelu":
            h = jnp.where(h >= 0.0, h, 0.3 * h)
    return x + h


if __name__ == "__main__":
    neurons = 32
    num_layers_per_block = 2
    batch = 300          # not a multiple of 128 -> exercises ragged last block + multi-step grid

    key = jax.random.PRNGKey(0)
    kx, kp = jax.random.split(key)
    x = jax.random.normal(kx, (batch, neurons), jnp.float32)
    weights, biases = _init_params(kp, num_layers_per_block, neurons)

    ok = True
    for activation_type in ("relu", "lrelu"):
        out = regressor_nn_skip_part(x, weights, biases, activation=activation_type)
        out = jax.block_until_ready(out)
        ref = _reference(x, weights, biases, activation=activation_type)
        ok &= out.shape == x.shape
        ok &= out.dtype == x.dtype
        ok &= bool(jnp.allclose(out, ref, atol=1e-5, rtol=1e-5))

    assert ok
    print("KERNEL_OK")
</pallas_src>

<mosaic_0001>
module attributes {stable_mosaic.version = 11 : i64} {
  func.func @_skip_block_kernel(%arg0: i32, %arg1: memref<128x32xf32, #tpu.memory_space<vmem>>, %arg2: memref<2x32x32xf32, #tpu.memory_space<vmem>>, %arg3: memref<2x1x32xf32, #tpu.memory_space<vmem>>, %arg4: memref<128x32xf32, #tpu.memory_space<vmem>>) attributes {dimension_semantics = [#tpu.dimension_semantics<parallel>], iteration_bounds = array<i64: 3>, scalar_prefetch = 0 : i64, scratch_operands = 0 : i64, tpu.core_type = #tpu.core_type<tc>, window_params = [{transform_indices = @transform_0, window_bounds = array<i64: 128, 32>}, {pipeline_mode = #tpu.pipeline_mode<synchronous>, transform_indices = @transform_1, window_bounds = array<i64: 2, 32, 32>}, {pipeline_mode = #tpu.pipeline_mode<synchronous>, transform_indices = @transform_2, window_bounds = array<i64: 2, 1, 32>}, {transform_indices = @transform_3, window_bounds = array<i64: 128, 32>}]} {
    %c0 = arith.constant 0 : index
    %c0_0 = arith.constant 0 : index
    %0 = vector.load %arg1[%c0, %c0_0] : memref<128x32xf32, #tpu.memory_space<vmem>>, vector<128x32xf32>
    %c0_1 = arith.constant 0 : index
    %c0_2 = arith.constant 0 : index
    %c0_3 = arith.constant 0 : index
    %1 = vector.load %arg2[%c0_1, %c0_2, %c0_3] : memref<2x32x32xf32, #tpu.memory_space<vmem>>, vector<1x32x32xf32>
    %2 = vector.shape_cast %1 : vector<1x32x32xf32> to vector<32x32xf32>
    %cst = arith.constant dense<0.000000e+00> : vector<128x32xf32>
    %3 = tpu.matmul %0, %2, %cst {dimension_numbers = #tpu.dot_dimension_numbers<[1], [0], [0], [1], [0, 0, 1, 1], [], []>} : vector<128x32xf32>, vector<32x32xf32>, vector<128x32xf32> -> vector<128x32xf32>
    %c0_4 = arith.constant 0 : index
    %c0_5 = arith.constant 0 : index
    %c0_6 = arith.constant 0 : index
    %4 = vector.load %arg3[%c0_4, %c0_5, %c0_6] : memref<2x1x32xf32, #tpu.memory_space<vmem>>, vector<1x1x32xf32>
    %5 = vector.shape_cast %4 : vector<1x1x32xf32> to vector<1x32xf32>
    %6 = vector.broadcast %5 : vector<1x32xf32> to vector<128x32xf32>
    %7 = arith.addf %3, %6 : vector<128x32xf32>
    %cst_7 = arith.constant 0.000000e+00 : f32
    %8 = vector.broadcast %cst_7 : f32 to vector<128x32xf32>
    %9 = arith.maximumf %7, %8 : vector<128x32xf32>
    %c1 = arith.constant 1 : index
    %c0_8 = arith.constant 0 : index
    %c0_9 = arith.constant 0 : index
    %10 = vector.load %arg2[%c1, %c0_8, %c0_9] : memref<2x32x32xf32, #tpu.memory_space<vmem>>, vector<1x32x32xf32>
    %11 = vector.shape_cast %10 : vector<1x32x32xf32> to vector<32x32xf32>
    %cst_10 = arith.constant dense<0.000000e+00> : vector<128x32xf32>
    %12 = tpu.matmul %9, %11, %cst_10 {dimension_numbers = #tpu.dot_dimension_numbers<[1], [0], [0], [1], [0, 0, 1, 1], [], []>} : vector<128x32xf32>, vector<32x32xf32>, vector<128x32xf32> -> vector<128x32xf32>
    %c1_11 = arith.constant 1 : index
    %c0_12 = arith.constant 0 : index
    %c0_13 = arith.constant 0 : index
    %13 = vector.load %arg3[%c1_11, %c0_12, %c0_13] : memref<2x1x32xf32, #tpu.memory_space<vmem>>, vector<1x1x32xf32>
    %14 = vector.shape_cast %13 : vector<1x1x32xf32> to vector<1x32xf32>
    %15 = vector.broadcast %14 : vector<1x32xf32> to vector<128x32xf32>
    %16 = arith.addf %12, %15 : vector<128x32xf32>
    %cst_14 = arith.constant 0.000000e+00 : f32
    %17 = vector.broadcast %cst_14 : f32 to vector<128x32xf32>
    %18 = arith.maximumf %16, %17 : vector<128x32xf32>
    %19 = arith.addf %0, %18 : vector<128x32xf32>
    %c0_15 = arith.constant 0 : index
    %c0_16 = arith.constant 0 : index
    %20 = vector.load %arg4[%c0_15, %c0_16] : memref<128x32xf32, #tpu.memory_space<vmem>>, vector<128x32xf32>
    tpu.vector_store %arg4[%c0_15, %c0_16], %19 {strides = array<i32>} : memref<128x32xf32, #tpu.memory_space<vmem>>, vector<128x32xf32>,
    return
  }
  func.func @transform_0(%arg0: i32) -> (i32, i32) {
    %c0_i32 = arith.constant 0 : i32
    %c0_i32_0 = arith.constant 0 : i32
    return %arg0, %c0_i32 : i32, i32
  }
  func.func @transform_1(%arg0: i32) -> (i32, i32, i32) {
    %c0_i32 = arith.constant 0 : i32
    %c0_i32_0 = arith.constant 0 : i32
    %c0_i32_1 = arith.constant 0 : i32
    %c0_i32_2 = arith.constant 0 : i32
    return %c0_i32, %c0_i32_0, %c0_i32_1 : i32, i32, i32
  }
  func.func @transform_2(%arg0: i32) -> (i32, i32, i32) {
    %c0_i32 = arith.constant 0 : i32
    %c0_i32_0 = arith.constant 0 : i32
    %c0_i32_1 = arith.constant 0 : i32
    %c0_i32_2 = arith.constant 0 : i32
    return %c0_i32, %c0_i32_0, %c0_i32_1 : i32, i32, i32
  }
  func.func @transform_3(%arg0: i32) -> (i32, i32) {
    %c0_i32 = arith.constant 0 : i32
    %c0_i32_0 = arith.constant 0 : i32
    return %arg0, %c0_i32 : i32, i32
  }
}

</mosaic_0001>

<llo_original>
// kernel: tpu_custom_call.1
$region0: #{tpu_custom_call.1}
  #allocation0 [shape = 'u32[]', space=smem, size = 0x4, offset = 0x4, fixed_abs, tag = 'smem constant byte address 0x4 - core index']
  #allocation1 [shape = 'u32[144,128]{1,0:T(1,128)}', space=vmem, size = 0x12000, scoped, tag = 'internal scratch']
  %s0 = inlined_call_operand.vmem [shape: f32[300,32], index: 0, kind: input, shape index: {}]
  %s1 = inlined_call_operand.vmem [shape: f32[2,32,32], index: 1, kind: input, shape index: {}]
  %s2 = inlined_call_operand.vmem [shape: f32[2,1,32], index: 2, kind: input, shape index: {}]
  %s3 = inlined_call_operand.vmem [shape: f32[300,32], index: 3, kind: output, shape index: {}]
  %s4 = sld [smem:[#allocation0]]
  $region93: #{tpu_custom_call.1} parent=0
    _
  %s6 = ssub.s32 1, %s4
  %s7 = scalar_select 0, %s6, %s4
  $region1: #{tpu_custom_call.1} parent=0
    #allocation2 [shape = 'u8[131072]{0}', space=vmem, size = 0x20000, scoped, tag = 'output window, operand 0']
    loop: start=0, step=1, limit=5
    $region2: #{tpu_custom_call.1} parent=1 // loop_pre_header
      _
    $region3: #{tpu_custom_call.1} parent=1 // loop_header
      %s9 = sphi 0, %s13
      %p10 = scmp.ge.s32.totalorder %s9, 5
      %s19 = sphi 0, %s21
      %s22 = sphi 0, %s19
      %s23 = sphi 0, %s22
      %s39 = sphi 0, %s23
      %s43 = sphi 0, %s43
      %s45 = sphi 0, %s43
      %s46 = sphi 0, %s45
      %s60 = sphi 0, %s46
      %s64 = sphi 0, %s64
      %s66 = sphi 0, %s64
      %s67 = sphi 0, %s66
      %s81 = sphi 0, %s67
      %s87 = sphi 0, %s89
      %s90 = sphi 0, %s87
      %s91 = sphi 0, %s90
      %s107 = sphi 0, %s91
    $region4: #{tpu_custom_call.1} parent=1 // loop_header_branch
      %12 = sbr.rel (%p10) target = $region8
    $region5: #{tpu_custom_call.1} parent=1 // loop_body
      %s14 = ssub.s32 %s9, 1
      %s15 = ssub.s32 %s9, 2
      %s16 = sadd.s32 %s9, 1
      %s17 = ssub.s32 %s9, %s16
      %p18 = scmp.eq.s32.totalorder %s17, 0
      %s20 = sadd.s32 %s19, 1
      %s21 = scalar_select %p18, %s19, %s20
      %p24 = pneg %p18
      %p25 = scmp.eq.s32.totalorder %s9, 2
      %p26 = por %p24, %p25
      %p27 = scmp.ne.s32.totalorder %s19, %s22
      %p28 = scmp.eq.s32.totalorder %s9, 0
      %p29 = por %p27, %p28
      %p30 = scmp.ne.s32.totalorder %s19, %s22
      %p31 = scmp.eq.s32.totalorder %s14, 2
      %p32 = por %p30, %p31
      %p33 = scmp.ne.s32.totalorder %s22, %s23
      %p34 = scmp.eq.s32.totalorder %s14, 0
      %p35 = por %p33, %p34
      %p36 = scmp.ne.s32.totalorder %s22, %s23
      %p37 = scmp.eq.s32.totalorder %s15, 2
      %p38 = por %p36, %p37
      %p40 = scmp.ne.s32.totalorder %s23, %s39
      %p41 = scmp.eq.s32.totalorder %s15, 0
      %p42 = por %p40, %p41
      %s44 = sadd.s32 %s43, 1
      %p47 = scmp.eq.s32.totalorder %s9, 2
      %p48 = scmp.ne.s32.totalorder %s43, %s45
      %p49 = scmp.eq.s32.totalorder %s9, 0
      %p50 = por %p48, %p49
      %p51 = scmp.ne.s32.totalorder %s43, %s45
      %p52 = scmp.eq.s32.totalorder %s14, 2
      %p53 = por %p51, %p52
      %p54 = scmp.ne.s32.totalorder %s45, %s46
      %p55 = scmp.eq.s32.totalorder %s14, 0
      %p56 = por %p54, %p55
      %p57 = scmp.ne.s32.totalorder %s45, %s46
      %p58 = scmp.eq.s32.totalorder %s15, 2
      %p59 = por %p57, %p58
      %p61 = scmp.ne.s32.totalorder %s46, %s60
      %p62 = scmp.eq.s32.totalorder %s15, 0
      %p63 = por %p61, %p62
      %s65 = sadd.s32 %s64, 1
      %p68 = scmp.eq.s32.totalorder %s9, 2
      %p69 = scmp.ne.s32.totalorder %s64, %s66
      %p70 = scmp.eq.s32.totalorder %s9, 0
      %p71 = por %p69, %p70
      %p72 = scmp.ne.s32.totalorder %s64, %s66
      %p73 = scmp.eq.s32.totalorder %s14, 2
      %p74 = por %p72, %p73
      %p75 = scmp.ne.s32.totalorder %s66, %s67
      %p76 = scmp.eq.s32.totalorder %s14, 0
      %p77 = por %p75, %p76
      %p78 = scmp.ne.s32.totalorder %s66, %s67
      %p79 = scmp.eq.s32.totalorder %s15, 2
      %p80 = por %p78, %p79
      %p82 = scmp.ne.s32.totalorder %s67, %s81
      %p83 = scmp.eq.s32.totalorder %s15, 0
      %p84 = por %p82, %p83
      %s85 = ssub.s32 %s9, %s16
      %p86 = scmp.eq.s32.totalorder %s85, 0
      %s88 = sadd.s32 %s87, 1
      %s89 = scalar_select %p86, %s87, %s88
      %p92 = pneg %p86
      %p93 = scmp.eq.s32.totalorder %s9, 2
      %p94 = por %p92, %p93
      %p95 = scmp.ne.s32.totalorder %s87, %s90
      %p96 = scmp.eq.s32.totalorder %s9, 0
      %p97 = por %p95, %p96
      %p98 = scmp.ne.s32.totalorder %s87, %s90
      %p99 = scmp.eq.s32.totalorder %s14, 2
      %p100 = por %p98, %p99
      %p101 = scmp.ne.s32.totalorder %s90, %s91
      %p102 = scmp.eq.s32.totalorder %s14, 0
      %p103 = por %p101, %p102
      %p104 = scmp.ne.s32.totalorder %s90, %s91
      %p105 = scmp.eq.s32.totalorder %s15, 2
      %p106 = por %p104, %p105
      %p108 = scmp.ne.s32.totalorder %s91, %s107
      %p109 = scmp.eq.s32.totalorder %s15, 0
      %p110 = por %p108, %p109
      %p111 = scmp.le.s32.totalorder 1, %s9
      %p112 = scmp.lt.s32.totalorder %s9, 4
      %p113 = pnand %p111, %p112
      %p114 = pneg %p113
      // Predicated region
      $region9: #{tpu_custom_call.1} parent=5 // pred_check
        _
      $region10: #{tpu_custom_call.1} parent=5 // pred_check_branch
        %116 = sbr.rel (%p113) target = $region12
      $region11: #{tpu_custom_call.1} parent=5 // pred_region
        %s117 = ssub.s32 %s9, 1
        // Predicated region
        $region13: #{tpu_custom_call.1} parent=11 // pred_check
          %p118 = pneg %p56
        $region14: #{tpu_custom_call.1} parent=11 // pred_check_branch
          %120 = sbr.rel (%p118) target = $region16
        $region15: #{tpu_custom_call.1} parent=11 // pred_region
          _
        $region16: #{tpu_custom_call.1} parent=11 // pred_fallthru
          _
        // Predicated region
        $region17: #{tpu_custom_call.1} parent=11 // pred_check
          %p121 = pneg %p77
        $region18: #{tpu_custom_call.1} parent=11 // pred_check_branch
          %123 = sbr.rel (%p121) target = $region20
        $region19: #{tpu_custom_call.1} parent=11 // pred_region
          _
        $region20: #{tpu_custom_call.1} parent=11 // pred_fallthru
          _
      $region12: #{tpu_custom_call.1} parent=5 // pred_fallthru
        _
      %p124 = scmp.lt.s32.totalorder %s9, 3
      // Predicated region
      $region21: #{tpu_custom_call.1} parent=5 // pred_check
        %p125 = pneg %p124
      $region22: #{tpu_custom_call.1} parent=5 // pred_check_branch
        %127 = sbr.rel (%p125) target = $region24
      $region23: #{tpu_custom_call.1} parent=5 // pred_region
        // Predicated region
        $region25: #{tpu_custom_call.1} parent=23 // pred_check
          %p128 = pneg %p29
        $region26: #{tpu_custom_call.1} parent=23 // pred_check_branch
          %130 = sbr.rel (%p128) target = $region28
        $region27: #{tpu_custom_call.1} parent=23 // pred_region
          %s131 = smul.u32 16, %s9
          %s132 = ssub.s32 38, %s131
          %p133 = scmp.lt.s32.totalorder %s132, 16
          %s134 = scalar_select %p133, %s132, 16
          %s135 = smul.u32 128, %s134
          %p136 = scmp.lt.s32.totalorder %s131, 37
          %s137 = scalar_select %p136, %s131, 37
          %s138 = smul.addr %s137, 8
          %s139 = scalar_lea.vmem %s0, %s138
          %s140 = smul.u32 16, %s9
          %s141 = ssub.s32 38, %s140
          %p142 = scmp.lt.s32.totalorder %s141, 16
          %s143 = scalar_select %p142, %s141, 16
          %s144 = smul.u32 128, %s143
        $region28: #{tpu_custom_call.1} parent=23 // pred_fallthru
          _
      $region24: #{tpu_custom_call.1} parent=5 // pred_fallthru
        _
      %p145 = scmp.le.s32.totalorder 1, %s9
      %p146 = scmp.lt.s32.totalorder %s9, 4
      %p147 = pnand %p145, %p146
      %p148 = pneg %p147
      // Predicated region
      $region29: #{tpu_custom_call.1} parent=5 // pred_check
        _
      $region30: #{tpu_custom_call.1} parent=5 // pred_check_branch
        %150 = sbr.rel (%p147) target = $region32
      $region31: #{tpu_custom_call.1} parent=5 // pred_region
        %s151 = ssub.s32 %s9, 1
        %s152 = smul.u32 16, %s14
        %s153 = ssub.s32 38, %s152
        %p154 = scmp.lt.s32.totalorder %s153, 16
        %s155 = scalar_select %p154, %s153, 16
        %s156 = smul.u32 128, %s155
        %p157 = scmp.lt.s32.totalorder %s152, 37
        %s158 = scalar_select %p157, %s152, 37
        %s159 = smul.addr %s158, 8
        %s160 = scalar_lea.vmem %s0, %s159
        %p161 = pneg %p35
        %p162 = pneg %p32
        %p163 = pneg %p56
        %p164 = pneg %p53
        %p165 = pneg %p77
        %p166 = pneg %p74
        %p167 = pneg %p103
        %p168 = pneg %p100
        %s169 = sand.u32 %s90, 1
        %s170 = sand.u32 %s90, 1
        %s171 = smul.addr %s170, 128
        %s172 = scalar_lea.vmem [#allocation2], %s171
        %s173 = smul.u32 16, %s14
        %s174 = ssub.s32 38, %s173
        %p175 = scmp.lt.s32.totalorder %s174, 16
        %s176 = scalar_select %p175, %s174, 16
        %s177 = smul.u32 128, %s176
        %p178 = scmp.lt.s32.totalorder %s173, 37
        %s179 = scalar_select %p178, %s173, 37
        %s180 = smul.addr %s179, 8
        %s181 = scalar_lea.vmem %s0, %s180
        %s182 = smul.u32 16, %s14
        %s183 = ssub.s32 38, %s182
        %p184 = scmp.lt.s32.totalorder %s183, 16
        %s185 = scalar_select %p184, %s183, 16
        %s186 = smul.u32 128, %s185
        %s187 = smul.u32 16, %s14
        %s188 = ssub.s32 38, %s187
        %p189 = scmp.lt.s32.totalorder %s188, 16
        %s190 = scalar_select %p189, %s188, 16
        %s191 = smul.u32 128, %s190
        %v192 = vld [vmem:[%s181] sm:$0xff]
        %v193 = vld [vmem:[%s181 + $0x8] sm:$0xff]
        %v194 = vld [vmem:[%s181 + $0x10] sm:$0xff]
        %v195 = vld [vmem:[%s181 + $0x18] sm:$0xff]
        %v196 = vld [vmem:[%s181 + $0x20] sm:$0xff]
        %v197 = vld [vmem:[%s181 + $0x28] sm:$0xff]
        %v198 = vld [vmem:[%s181 + $0x30] sm:$0xff]
        %v199 = vld [vmem:[%s181 + $0x38] sm:$0xff]
        %v200 = vld [vmem:[%s181 + $0x40] sm:$0xff]
        %v201 = vld [vmem:[%s181 + $0x48] sm:$0xff]
        %v202 = vld [vmem:[%s181 + $0x50] sm:$0xff]
        %v203 = vld [vmem:[%s181 + $0x58] sm:$0xff]
        %v204 = vld [vmem:[%s181 + $0x60] sm:$0xff]
        %v205 = vld [vmem:[%s181 + $0x68] sm:$0xff]
        %v206 = vld [vmem:[%s181 + $0x70] sm:$0xff]
        %v207 = vld [vmem:[%s181 + $0x78] sm:$0xff]
        %v208 = vld [vmem:[%s1] sm:$0xff]
        %v209 = vld [vmem:[%s1 + $0x8] sm:$0xff]
        %v210 = vld [vmem:[%s1 + $0x10] sm:$0xff]
        %v211 = vld [vmem:[%s1 + $0x18] sm:$0xff]
        %v212 = vld [vmem:[%s2] sm:$0x1]
        %v214 = vlaneseq
        %v215 = vshrl.u32 %v214, 7
        %v216 = vsub.s32 0, %v215
        %v217 = vrot.slane %v212, %v216
        %vm219 = vcmask 261120
        %v221 = vsel %vm219, %v192, 0
        %v224 = vsel %vm219, %v193, 0
        %v227 = vsel %vm219, %v194, 0
        %v230 = vsel %vm219, %v195, 0
        %v233 = vsel %vm219, %v196, 0
        %v236 = vsel %vm219, %v197, 0
        %v239 = vsel %vm219, %v198, 0
        %v242 = vsel %vm219, %v199, 0
        %v245 = vsel %vm219, %v200, 0
        %v248 = vsel %vm219, %v201, 0
        %v251 = vsel %vm219, %v202, 0
        %v254 = vsel %vm219, %v203, 0
        %v257 = vsel %vm219, %v204, 0
        %v260 = vsel %vm219, %v205, 0
        %v263 = vsel %vm219, %v206, 0
        %v266 = vsel %vm219, %v207, 0
        %268 = vmatprep.subr.mxu0 0.0
        %269 = vmatpush1.msra.mxu0 %v208
        %270 = vmatprep.subr.mxu0 0.0
        %271 = vmatpush1.msra.mxu0 %v209
        %272 = vmatprep.subr.mxu0 0.0
        %273 = vmatpush1.msra.mxu0 %v210
        %274 = vmatprep.subr.mxu0 0.0
        %275 = vmatpush1.msra.mxu0 %v211
        %276 = vmatprep.subr.mxu0 0.0
        %277 = vmatpush1.msra.mxu0 0.0
        %278 = vmatprep.subr.mxu0 0.0
        %279 = vmatpush1.msra.mxu0 0.0
        %280 = vmatprep.subr.mxu0 0.0
        %281 = vmatpush1.msra.mxu0 0.0
        %282 = vmatprep.subr.mxu0 0.0
        %283 = vmatpush1.msra.mxu0 0.0
        %284 = vmatprep.subr.mxu0 0.0
        %285 = vmatpush1.msra.mxu0 0.0
        %286 = vmatprep.subr.mxu0 0.0
        %287 = vmatpush1.msra.mxu0 0.0
        %288 = vmatprep.subr.mxu0 0.0
        %289 = vmatpush1.msra.mxu0 0.0
        %290 = vmatprep.subr.mxu0 0.0
        %291 = vmatpush1.msra.mxu0 0.0
        %292 = vmatprep.subr.mxu0 0.0
        %293 = vmatpush1.msra.mxu0 0.0
        %294 = vmatprep.subr.mxu0 0.0
        %295 = vmatpush1.msra.mxu0 0.0
        %296 = vmatprep.subr.mxu0 0.0
        %297 = vmatpush1.msra.mxu0 0.0
        %298 = vmatprep.subr.mxu0 0.0
        %299 = vmatpush1.msra.mxu0 0.0
        %300 = vmatprep.subr.mxu0 0.0
        %301 = vmatpush1.msra.mxu0 0.0
        %302 = vmatprep.subr.mxu0 0.0
        %303 = vmatpush1.msra.mxu0 0.0
        %304 = vmatprep.subr.mxu0 0.0
        %305 = vmatpush1.msra.mxu0 0.0
        %306 = vmatprep.subr.mxu0 0.0
        %307 = vmatpush1.msra.mxu0 0.0
        %308 = vmatprep.subr.mxu0 0.0
        %309 = vmatpush1.msra.mxu0 0.0
        %310 = vmatprep.subr.mxu0 0.0
        %311 = vmatpush1.msra.mxu0 0.0
        %312 = vmatprep.subr.mxu0 0.0
        %313 = vmatpush1.msra.mxu0 0.0
        %314 = vmatprep.subr.mxu0 0.0
        %315 = vmatpush1.msra.mxu0 0.0
        %316 = vmatprep.subr.mxu0 0.0
        %317 = vmatpush1.msra.mxu0 0.0
        %318 = vmatprep.subr.mxu0 0.0
        %319 = vmatpush1.msra.mxu0 0.0
        %320 = vmatprep.subr.mxu0 0.0
        %321 = vmatpush1.msra.mxu0 0.0
        %322 = vmatprep.subr.mxu0 0.0
        %323 = vmatpush1.msra.mxu0 0.0
        %324 = vmatprep.subr.mxu0 0.0
        %325 = vmatpush1.msra.mxu0 0.0
        %326 = vmatprep.subr.mxu0 0.0
        %327 = vmatpush1.msra.mxu0 0.0
        %328 = vmatprep.subr.mxu0 0.0
        %329 = vmatpush1.msra.mxu0 0.0
        %330 = vmatprep.subr.mxu0 0.0
        %331 = vmatpush1.msra.mxu0 0.0
        %332 = vmatprep.mubr.f32.mxu0 0.0
        %333 = vmatmul.mubr.f32.gmra.mrb[0].mxu0 %v221
        %v334 = vpop.f32.mrb[0].mxu0
        %v335 = vadd.f32 %v217, %v334
        %v336 = vpop.f32.mrb[0].mxu0
        %337 = vmatprep.mubr.f32.mxu0 0.0
        %338 = vmatmul.mubr.f32.gmra.mrb[0].mxu0 %v224
        %v339 = vpop.f32.mrb[0].mxu0
        %v340 = vadd.f32 %v217, %v339
        %v341 = vpop.f32.mrb[0].mxu0
        %342 = vmatprep.mubr.f32.mxu0 0.0
        %343 = vmatmul.mubr.f32.gmra.mrb[0].mxu0 %v227
        %v344 = vpop.f32.mrb[0].mxu0
        %v345 = vadd.f32 %v217, %v344
        %v346 = vpop.f32.mrb[0].mxu0
        %347 = vmatprep.mubr.f32.mxu0 0.0
        %348 = vmatmul.mubr.f32.gmra.mrb[0].mxu0 %v230
        %v349 = vpop.f32.mrb[0].mxu0
        %v350 = vadd.f32 %v217, %v349
        %v351 = vpop.f32.mrb[0].mxu0
        %352 = vmatprep.mubr.f32.mxu0 0.0
        %353 = vmatmul.mubr.f32.gmra.mrb[0].mxu0 %v233
        %v354 = vpop.f32.mrb[0].mxu0
        %v355 = vadd.f32 %v217, %v354
        %v356 = vpop.f32.mrb[0].mxu0
        %357 = vmatprep.mubr.f32.mxu0 0.0
        %358 = vmatmul.mubr.f32.gmra.mrb[0].mxu0 %v236
        %v359 = vpop.f32.mrb[0].mxu0
        %v360 = vadd.f32 %v217, %v359
        %v361 = vpop.f32.mrb[0].mxu0
        %362 = vmatprep.mubr.f32.mxu0 0.0
        %363 = vmatmul.mubr.f32.gmra.mrb[0].mxu0 %v239
        %v364 = vpop.f32.mrb[0].mxu0
        %v365 = vadd.f32 %v217, %v364
        %v366 = vpop.f32.mrb[0].mxu0
        %367 = vmatprep.mubr.f32.mxu0 0.0
        %368 = vmatmul.mubr.f32.gmra.mrb[0].mxu0 %v242
        %v369 = vpop.f32.mrb[0].mxu0
        %v370 = vadd.f32 %v217, %v369
        %v371 = vpop.f32.mrb[0].mxu0
        %372 = vmatprep.mubr.f32.mxu0 0.0
        %373 = vmatmul.mubr.f32.gmra.mrb[0].mxu0 %v245
        %v374 = vpop.f32.mrb[0].mxu0
        %v375 = vadd.f32 %v217, %v374
        %v376 = vpop.f32.mrb[0].mxu0
        %377 = vmatprep.mubr.f32.mxu0 0.0
        %378 = vmatmul.mubr.f32.gmra.mrb[0].mxu0 %v248
        %v379 = vpop.f32.mrb[0].mxu0
        %v380 = vadd.f32 %v217, %v379
        %v381 = vpop.f32.mrb[0].mxu0
        %382 = vmatprep.mubr.f32.mxu0 0.0
        %383 = vmatmul.mubr.f32.gmra.mrb[0].mxu0 %v251
        %v384 = vpop.f32.mrb[0].mxu0
        %v385 = vadd.f32 %v217, %v384
        %v386 = vpop.f32.mrb[0].mxu0
        %387 = vmatprep.mubr.f32.mxu0 0.0
        %388 = vmatmul.mubr.f32.gmra.mrb[0].mxu0 %v254
        %v389 = vpop.f32.mrb[0].mxu0
        %v390 = vadd.f32 %v217, %v389
        %v391 = vpop.f32.mrb[0].mxu0
        %392 = vmatprep.mubr.f32.mxu0 0.0
        %393 = vmatmul.mubr.f32.gmra.mrb[0].mxu0 %v257
        %v394 = vpop.f32.mrb[0].mxu0
        %v395 = vadd.f32 %v217, %v394
        %v396 = vpop.f32.mrb[0].mxu0
        %397 = vmatprep.mubr.f32.mxu0 0.0
        %398 = vmatmul.mubr.f32.gmra.mrb[0].mxu0 %v260
        %v399 = vpop.f32.mrb[0].mxu0
        %v400 = vadd.f32 %v217, %v399
        %v401 = vpop.f32.mrb[0].mxu0
        %402 = vmatprep.mubr.f32.mxu0 0.0
        %403 = vmatmul.mubr.f32.gmra.mrb[0].mxu0 %v263
        %v404 = vpop.f32.mrb[0].mxu0
        %v405 = vadd.f32 %v217, %v404
        %v406 = vpop.f32.mrb[0].mxu0
        %407 = vmatprep.mubr.f32.mxu0 0.0
        %408 = vmatmul.mubr.f32.gmra.mrb[0].mxu0 %v266
        %v409 = vpop.f32.mrb[0].mxu0
        %v410 = vadd.f32 %v217, %v409
        %v411 = vpop.f32.mrb[0].mxu0
        %412 = vdwg.mxu0
        %v413 = vmax.f32 %v335, 0.0
        %v414 = vmax.f32 %v340, 0.0
        %v415 = vmax.f32 %v345, 0.0
        %v416 = vmax.f32 %v350, 0.0
        %v417 = vmax.f32 %v355, 0.0
        %v418 = vmax.f32 %v360, 0.0
        %v419 = vmax.f32 %v365, 0.0
        %v420 = vmax.f32 %v370, 0.0
        %v421 = vmax.f32 %v375, 0.0
        %v422 = vmax.f32 %v380, 0.0
        %v423 = vmax.f32 %v385, 0.0
        %v424 = vmax.f32 %v390, 0.0
        %v425 = vmax.f32 %v395, 0.0
        %v426 = vmax.f32 %v400, 0.0
        %v427 = vmax.f32 %v405, 0.0
        %v428 = vmax.f32 %v410, 0.0
        %s429 = scalar_lea.vmem %s1, 32
        %v430 = vld [vmem:[%s429] sm:$0xff]
        %v431 = vld [vmem:[%s429 + $0x8] sm:$0xff]
        %v432 = vld [vmem:[%s429 + $0x10] sm:$0xff]
        %v433 = vld [vmem:[%s429 + $0x18] sm:$0xff]
        %s434 = scalar_lea.vmem %s2, 1
        %v435 = vld [vmem:[%s434] sm:$0x1]
        %v437 = vlaneseq
        %v438 = vshrl.u32 %v437, 7
        %v439 = vsub.s32 0, %v438
        %v440 = vrot.slane %v435, %v439
        %v443 = vsel %vm219, %v413, 0
        %v446 = vsel %vm219, %v414, 0
        %v449 = vsel %vm219, %v415, 0
        %v452 = vsel %vm219, %v416, 0
        %v455 = vsel %vm219, %v417, 0
        %v458 = vsel %vm219, %v418, 0
        %v461 = vsel %vm219, %v419, 0
        %v464 = vsel %vm219, %v420, 0
        %v467 = vsel %vm219, %v421, 0
        %v470 = vsel %vm219, %v422, 0
        %v473 = vsel %vm219, %v423, 0
        %v476 = vsel %vm219, %v424, 0
        %v479 = vsel %vm219, %v425, 0
        %v482 = vsel %vm219, %v426, 0
        %v485 = vsel %vm219, %v427, 0
        %v488 = vsel %vm219, %v428, 0
        %490 = vmatprep.subr.mxu0 0.0
        %491 = vmatpush1.msra.mxu0 %v430
        %492 = vmatprep.subr.mxu0 0.0
        %493 = vmatpush1.msra.mxu0 %v431
        %494 = vmatprep.subr.mxu0 0.0
        %495 = vmatpush1.msra.mxu0 %v432
        %496 = vmatprep.subr.mxu0 0.0
        %497 = vmatpush1.msra.mxu0 %v433
        %498 = vmatprep.subr.mxu0 0.0
        %499 = vmatpush1.msra.mxu0 0.0
        %500 = vmatprep.subr.mxu0 0.0
        %501 = vmatpush1.msra.mxu0 0.0
        %502 = vmatprep.subr.mxu0 0.0
        %503 = vmatpush1.msra.mxu0 0.0
        %504 = vmatprep.subr.mxu0 0.0
        %505 = vmatpush1.msra.mxu0 0.0
        %506 = vmatprep.subr.mxu0 0.0
        %507 = vmatpush1.msra.mxu0 0.0
        %508 = vmatprep.subr.mxu0 0.0
        %509 = vmatpush1.msra.mxu0 0.0
        %510 = vmatprep.subr.mxu0 0.0
        %511 = vmatpush1.msra.mxu0 0.0
        %512 = vmatprep.subr.mxu0 0.0
        %513 = vmatpush1.msra.mxu0 0.0
        %514 = vmatprep.subr.mxu0 0.0
        %515 = vmatpush1.msra.mxu0 0.0
        %516 = vmatprep.subr.mxu0 0.0
        %517 = vmatpush1.msra.mxu0 0.0
        %518 = vmatprep.subr.mxu0 0.0
        %519 = vmatpush1.msra.mxu0 0.0
        %520 = vmatprep.subr.mxu0 0.0
        %521 = vmatpush1.msra.mxu0 0.0
        %522 = vmatprep.subr.mxu0 0.0
        %523 = vmatpush1.msra.mxu0 0.0
        %524 = vmatprep.subr.mxu0 0.0
        %525 = vmatpush1.msra.mxu0 0.0
        %526 = vmatprep.subr.mxu0 0.0
        %527 = vmatpush1.msra.mxu0 0.0
        %528 = vmatprep.subr.mxu0 0.0
        %529 = vmatpush1.msra.mxu0 0.0
        %530 = vmatprep.subr.mxu0 0.0
        %531 = vmatpush1.msra.mxu0 0.0
        %532 = vmatprep.subr.mxu0 0.0
        %533 = vmatpush1.msra.mxu0 0.0
        %534 = vmatprep.subr.mxu0 0.0
        %535 = vmatpush1.msra.mxu0 0.0
        %536 = vmatprep.subr.mxu0 0.0
        %537 = vmatpush1.msra.mxu0 0.0
        %538 = vmatprep.subr.mxu0 0.0
        %539 = vmatpush1.msra.mxu0 0.0
        %540 = vmatprep.subr.mxu0 0.0
        %541 = vmatpush1.msra.mxu0 0.0
        %542 = vmatprep.subr.mxu0 0.0
        %543 = vmatpush1.msra.mxu0 0.0
        %544 = vmatprep.subr.mxu0 0.0
        %545 = vmatpush1.msra.mxu0 0.0
        %546 = vmatprep.subr.mxu0 0.0
        %547 = vmatpush1.msra.mxu0 0.0
        %548 = vmatprep.subr.mxu0 0.0
        %549 = vmatpush1.msra.mxu0 0.0
        %550 = vmatprep.subr.mxu0 0.0
        %551 = vmatpush1.msra.mxu0 0.0
        %552 = vmatprep.subr.mxu0 0.0
        %553 = vmatpush1.msra.mxu0 0.0
        %554 = vmatprep.mubr.f32.mxu0 0.0
        %555 = vmatmul.mubr.f32.gmra.mrb[0].mxu0 %v443
        %v556 = vpop.f32.mrb[0].mxu0
        %v557 = vadd.f32 %v440, %v556
        %v558 = vpop.f32.mrb[0].mxu0
        %559 = vmatprep.mubr.f32.mxu0 0.0
        %560 = vmatmul.mubr.f32.gmra.mrb[0].mxu0 %v446
        %v561 = vpop.f32.mrb[0].mxu0
        %v562 = vadd.f32 %v440, %v561
        %v563 = vpop.f32.mrb[0].mxu0
        %564 = vmatprep.mubr.f32.mxu0 0.0
        %565 = vmatmul.mubr.f32.gmra.mrb[0].mxu0 %v449
        %v566 = vpop.f32.mrb[0].mxu0
        %v567 = vadd.f32 %v440, %v566
        %v568 = vpop.f32.mrb[0].mxu0
        %569 = vmatprep.mubr.f32.mxu0 0.0
        %570 = vmatmul.mubr.f32.gmra.mrb[0].mxu0 %v452
        %v571 = vpop.f32.mrb[0].mxu0
        %v572 = vadd.f32 %v440, %v571
        %v573 = vpop.f32.mrb[0].mxu0
        %574 = vmatprep.mubr.f32.mxu0 0.0
        %575 = vmatmul.mubr.f32.gmra.mrb[0].mxu0 %v455
        %v576 = vpop.f32.mrb[0].mxu0
        %v577 = vadd.f32 %v440, %v576
        %v578 = vpop.f32.mrb[0].mxu0
        %579 = vmatprep.mubr.f32.mxu0 0.0
        %580 = vmatmul.mubr.f32.gmra.mrb[0].mxu0 %v458
        %v581 = vpop.f32.mrb[0].mxu0
        %v582 = vadd.f32 %v440, %v581
        %v583 = vpop.f32.mrb[0].mxu0
        %584 = vmatprep.mubr.f32.mxu0 0.0
        %585 = vmatmul.mubr.f32.gmra.mrb[0].mxu0 %v461
        %v586 = vpop.f32.mrb[0].mxu0
        %v587 = vadd.f32 %v440, %v586
        %v588 = vpop.f32.mrb[0].mxu0
        %589 = vmatprep.mubr.f32.mxu0 0.0
        %590 = vmatmul.mubr.f32.gmra.mrb[0].mxu0 %v464
        %v591 = vpop.f32.mrb[0].mxu0
        %v592 = vadd.f32 %v440, %v591
        %v593 = vpop.f32.mrb[0].mxu0
        %594 = vmatprep.mubr.f32.mxu0 0.0
        %595 = vmatmul.mubr.f32.gmra.mrb[0].mxu0 %v467
        %v596 = vpop.f32.mrb[0].mxu0
        %v597 = vadd.f32 %v440, %v596
        %v598 = vpop.f32.mrb[0].mxu0
        %599 = vmatprep.mubr.f32.mxu0 0.0
        %600 = vmatmul.mubr.f32.gmra.mrb[0].mxu0 %v470
        %v601 = vpop.f32.mrb[0].mxu0
        %v602 = vadd.f32 %v440, %v601
        %v603 = vpop.f32.mrb[0].mxu0
        %604 = vmatprep.mubr.f32.mxu0 0.0
        %605 = vmatmul.mubr.f32.gmra.mrb[0].mxu0 %v473
        %v606 = vpop.f32.mrb[0].mxu0
        %v607 = vadd.f32 %v440, %v606
        %v608 = vpop.f32.mrb[0].mxu0
        %609 = vmatprep.mubr.f32.mxu0 0.0
        %610 = vmatmul.mubr.f32.gmra.mrb[0].mxu0 %v476
        %v611 = vpop.f32.mrb[0].mxu0
        %v612 = vadd.f32 %v440, %v611
        %v613 = vpop.f32.mrb[0].mxu0
        %614 = vmatprep.mubr.f32.mxu0 0.0
        %615 = vmatmul.mubr.f32.gmra.mrb[0].mxu0 %v479
        %v616 = vpop.f32.mrb[0].mxu0
        %v617 = vadd.f32 %v440, %v616
        %v618 = vpop.f32.mrb[0].mxu0
        %619 = vmatprep.mubr.f32.mxu0 0.0
        %620 = vmatmul.mubr.f32.gmra.mrb[0].mxu0 %v482
        %v621 = vpop.f32.mrb[0].mxu0
        %v622 = vadd.f32 %v440, %v621
        %v623 = vpop.f32.mrb[0].mxu0
        %624 = vmatprep.mubr.f32.mxu0 0.0
        %625 = vmatmul.mubr.f32.gmra.mrb[0].mxu0 %v485
        %v626 = vpop.f32.mrb[0].mxu0
        %v627 = vadd.f32 %v440, %v626
        %v628 = vpop.f32.mrb[0].mxu0
        %629 = vmatprep.mubr.f32.mxu0 0.0
        %630 = vmatmul.mubr.f32.gmra.mrb[0].mxu0 %v488
        %v631 = vpop.f32.mrb[0].mxu0
        %v632 = vadd.f32 %v440, %v631
        %v633 = vpop.f32.mrb[0].mxu0
        %634 = vdwg.mxu0
        %v635 = vmax.f32 %v557, 0.0
        %v636 = vmax.f32 %v562, 0.0
        %v637 = vmax.f32 %v567, 0.0
        %v638 = vmax.f32 %v572, 0.0
        %v639 = vmax.f32 %v577, 0.0
        %v640 = vmax.f32 %v582, 0.0
        %v641 = vmax.f32 %v587, 0.0
        %v642 = vmax.f32 %v592, 0.0
        %v643 = vmax.f32 %v597, 0.0
        %v644 = vmax.f32 %v602, 0.0
        %v645 = vmax.f32 %v607, 0.0
        %v646 = vmax.f32 %v612, 0.0
        %v647 = vmax.f32 %v617, 0.0
        %v648 = vmax.f32 %v622, 0.0
        %v649 = vmax.f32 %v627, 0.0
        %v650 = vmax.f32 %v632, 0.0
        %v651 = vadd.f32 %v192, %v635
        %v652 = vadd.f32 %v193, %v636
        %v653 = vadd.f32 %v194, %v637
        %v654 = vadd.f32 %v195, %v638
        %v655 = vadd.f32 %v196, %v639
        %v656 = vadd.f32 %v197, %v640
        %v657 = vadd.f32 %v198, %v641
        %v658 = vadd.f32 %v199, %v642
        %v659 = vadd.f32 %v200, %v643
        %v660 = vadd.f32 %v201, %v644
        %v661 = vadd.f32 %v202, %v645
        %v662 = vadd.f32 %v203, %v646
        %v663 = vadd.f32 %v204, %v647
        %v664 = vadd.f32 %v205, %v648
        %v665 = vadd.f32 %v206, %v649
        %v666 = vadd.f32 %v207, %v650
        %667 = vst.msk [vmem:[%s172] sm:$0xff] %vm219, %v651
        %668 = vst.msk [vmem:[%s172 + $0x8] sm:$0xff] %vm219, %v652
        %669 = vst.msk [vmem:[%s172 + $0x10] sm:$0xff] %vm219, %v653
        %670 = vst.msk [vmem:[%s172 + $0x18] sm:$0xff] %vm219, %v654
        %671 = vst.msk [vmem:[%s172 + $0x20] sm:$0xff] %vm219, %v655
        %672 = vst.msk [vmem:[%s172 + $0x28] sm:$0xff] %vm219, %v656
        %673 = vst.msk [vmem:[%s172 + $0x30] sm:$0xff] %vm219, %v657
        %674 = vst.msk [vmem:[%s172 + $0x38] sm:$0xff] %vm219, %v658
        %675 = vst.msk [vmem:[%s172 + $0x40] sm:$0xff] %vm219, %v659
        %676 = vst.msk [vmem:[%s172 + $0x48] sm:$0xff] %vm219, %v660
        %677 = vst.msk [vmem:[%s172 + $0x50] sm:$0xff] %vm219, %v661
        %678 = vst.msk [vmem:[%s172 + $0x58] sm:$0xff] %vm219, %v662
        %679 = vst.msk [vmem:[%s172 + $0x60] sm:$0xff] %vm219, %v663
        %680 = vst.msk [vmem:[%s172 + $0x68] sm:$0xff] %vm219, %v664
        %681 = vst.msk [vmem:[%s172 + $0x70] sm:$0xff] %vm219, %v665
        %682 = vst.msk [vmem:[%s172 + $0x78] sm:$0xff] %vm219, %v666
        %s683 = sand.u32 %s90, 1
        %s684 = sand.u32 %s90, 1
        %s685 = smul.addr %s684, 128
        %s686 = scalar_lea.vmem [#allocation2], %s685
        // Predicated region
        $region33: #{tpu_custom_call.1} parent=31 // pred_check
          %p687 = pneg %p100
        $region34: #{tpu_custom_call.1} parent=31 // pred_check_branch
          %689 = sbr.rel (%p687) target = $region36
        $region35: #{tpu_custom_call.1} parent=31 // pred_region
          %s690 = smul.u32 16, %s14
          %s691 = ssub.s32 38, %s690
          %p692 = scmp.lt.s32.totalorder %s691, 16
          %s693 = scalar_select %p692, %s691, 16
          %s694 = smul.u32 128, %s693
          %p695 = scmp.ne.s32.totalorder 0, %s694
          %s696 = smul.addr %s690, 8
          %s697 = scalar_lea.vmem %s3, %s696
          // Predicated region
          $region37: #{tpu_custom_call.1} parent=35 // pred_check
            %p698 = pneg %p695
          $region38: #{tpu_custom_call.1} parent=35 // pred_check_branch
            %700 = sbr.rel (%p698) target = $region40
          $region39: #{tpu_custom_call.1} parent=35 // pred_region
            // Predicated region
            $region41: #{tpu_custom_call.1} parent=39 // pred_check
              _
            $region42: #{tpu_custom_call.1} parent=39 // pred_check_branch
              %702 = sbr.rel (0) target = $region44
            $region43: #{tpu_custom_call.1} parent=39 // pred_region
              // Predicated region
              $region63: #{tpu_custom_call.1} parent=43 // pred_check
                _
              $region64: #{tpu_custom_call.1} parent=43 // pred_check_branch
                %781 = sbr.rel (0) target = $region66
              $region65: #{tpu_custom_call.1} parent=43 // pred_region
                %s782 = sshrl.u32 %s693, 4
                // While loop
                $region67: #{tpu_custom_call.1} parent=65 // loop_pre_header
                  _
                $region68: #{tpu_custom_call.1} parent=65 // loop_header
                  %s784 = sphi 0, %s786
                  %p785 = scmp.ge.s32.totalorder %s784, %s782
                  %s789 = sphi 0, %s826
                  %s790 = sphi %s686, %s829
                  %s791 = sphi %s697, %s830
                $region69: #{tpu_custom_call.1} parent=65 // loop_header_branch
                  %788 = sbr.rel (%p785) target = $region73
                $region70: #{tpu_custom_call.1} parent=65 // loop_body
                  %v792 = vld [vmem:[%s790] sm:$0xff]
                  %793 = vst [vmem:[%s791] sm:$0xff] %v792
                  %v794 = vld [vmem:[%s790 + $0x8] sm:$0xff]
                  %795 = vst [vmem:[%s791 + $0x8] sm:$0xff] %v794
                  %v796 = vld [vmem:[%s790 + $0x10] sm:$0xff]
                  %797 = vst [vmem:[%s791 + $0x10] sm:$0xff] %v796
                  %v798 = vld [vmem:[%s790 + $0x18] sm:$0xff]
                  %799 = vst [vmem:[%s791 + $0x18] sm:$0xff] %v798
                  %v800 = vld [vmem:[%s790 + $0x20] sm:$0xff]
                  %801 = vst [vmem:[%s791 + $0x20] sm:$0xff] %v800
                  %v802 = vld [vmem:[%s790 + $0x28] sm:$0xff]
                  %803 = vst [vmem:[%s791 + $0x28] sm:$0xff] %v802
                  %v804 = vld [vmem:[%s790 + $0x30] sm:$0xff]
                  %805 = vst [vmem:[%s791 + $0x30] sm:$0xff] %v804
                  %v806 = vld [vmem:[%s790 + $0x38] sm:$0xff]
                  %807 = vst [vmem:[%s791 + $0x38] sm:$0xff] %v806
                  %v808 = vld [vmem:[%s790 + $0x40] sm:$0xff]
                  %809 = vst [vmem:[%s791 + $0x40] sm:$0xff] %v808
                  %v810 = vld [vmem:[%s790 + $0x48] sm:$0xff]
                  %811 = vst [vmem:[%s791 + $0x48] sm:$0xff] %v810
                  %v812 = vld [vmem:[%s790 + $0x50] sm:$0xff]
                  %813 = vst [vmem:[%s791 + $0x50] sm:$0xff] %v812
                  %v814 = vld [vmem:[%s790 + $0x58] sm:$0xff]
                  %815 = vst [vmem:[%s791 + $0x58] sm:$0xff] %v814
                  %v816 = vld [vmem:[%s790 + $0x60] sm:$0xff]
                  %817 = vst [vmem:[%s791 + $0x60] sm:$0xff] %v816
                  %v818 = vld [vmem:[%s790 + $0x68] sm:$0xff]
                  %819 = vst [vmem:[%s791 + $0x68] sm:$0xff] %v818
                  %v820 = vld [vmem:[%s790 + $0x70] sm:$0xff]
                  %821 = vst [vmem:[%s791 + $0x70] sm:$0xff] %v820
                  %v822 = vld [vmem:[%s790 + $0x78] sm:$0xff]
                  %823 = vst [vmem:[%s791 + $0x78] sm:$0xff] %v822
                  %s824 = sadd.s32 1, %s789
                  %p825 = scmp.ge.s32.totalorder %s824, %s782
                  %s826 = scalar_select %p825, 0, %s824
                  %s827 = smul.u32 %s826, 128
                  %s828 = smul.u32 %s826, 128
                  %s829 = scalar_lea.vmem %s686, %s827 [#allocation2]
                  %s830 = scalar_lea.vmem %s697, %s828
                $region71: #{tpu_custom_call.1} parent=65 // loop_footer
                  %s786 = sadd.s32 %s784, 1
                $region72: #{tpu_custom_call.1} parent=65 // loop_footer_branch
                  %783 = sbr.rel target = $region68
                $region73: #{tpu_custom_call.1} parent=65 // loop_exit
                  _
                %s831 = sshrl.u32 %s693, 4
                %s832 = sand.u32 %s693, 15
                %s833 = smul.u32 %s831, 16
                %s834 = smul.u32 8, %s833
                %s835 = scalar_lea.vmem %s686, %s834 [#allocation2]
                %s836 = smul.u32 8, %s833
                %s837 = scalar_lea.vmem %s697, %s836
                // While loop
                $region74: #{tpu_custom_call.1} parent=65 // loop_pre_header
                  _
                $region75: #{tpu_custom_call.1} parent=65 // loop_header
                  %s839 = sphi 0, %s841
                  %p840 = scmp.ge.s32.totalorder %s839, %s832
                  %s844 = sphi 0, %s851
                  %s845 = sphi %s835, %s854
                  %s846 = sphi %s837, %s855
                $region76: #{tpu_custom_call.1} parent=65 // loop_header_branch
                  %843 = sbr.rel (%p840) target = $region80
                $region77: #{tpu_custom_call.1} parent=65 // loop_body
                  %v847 = vld [vmem:[%s845] sm:$0xff]
                  %848 = vst [vmem:[%s846] sm:$0xff] %v847
                  %s849 = sadd.s32 1, %s844
                  %p850 = scmp.ge.s32.totalorder %s849, %s832
                  %s851 = scalar_select %p850, 0, %s849
                  %s852 = smul.u32 %s851, 8
                  %s853 = smul.u32 %s851, 8
                  %s854 = scalar_lea.vmem %s835, %s852 [#allocation2]
                  %s855 = scalar_lea.vmem %s837, %s853
                $region78: #{tpu_custom_call.1} parent=65 // loop_footer
                  %s841 = sadd.s32 %s839, 1
                $region79: #{tpu_custom_call.1} parent=65 // loop_footer_branch
                  %838 = sbr.rel target = $region75
                $region80: #{tpu_custom_call.1} parent=65 // loop_exit
                  _
              $region66: #{tpu_custom_call.1} parent=43 // pred_fallthru
                _
              // Predicated region
              $region81: #{tpu_custom_call.1} parent=43 // pred_check
                _
              $region82: #{tpu_custom_call.1} parent=43 // pred_check_branch
                %857 = sbr.rel target = $region84
              $region83: #{tpu_custom_call.1} parent=43 // pred_region
                _
              $region84: #{tpu_custom_call.1} parent=43 // pred_fallthru
                _
            $region44: #{tpu_custom_call.1} parent=39 // pred_fallthru
              _
            // Predicated region
            $region45: #{tpu_custom_call.1} parent=39 // pred_check
              _
            $region46: #{tpu_custom_call.1} parent=39 // pred_check_branch
              %704 = sbr.rel target = $region48
            $region47: #{tpu_custom_call.1} parent=39 // pred_region
              %s706 = sshrl.u32 %s693, 4
              // While loop
              $region49: #{tpu_custom_call.1} parent=47 // loop_pre_header
                _
              $region50: #{tpu_custom_call.1} parent=47 // loop_header
                %s708 = sphi 0, %s710
                %p709 = scmp.ge.s32.totalorder %s708, %s706
                %s713 = sphi 0, %s750
                %s714 = sphi %s686, %s753
                %s715 = sphi %s697, %s754
              $region51: #{tpu_custom_call.1} parent=47 // loop_header_branch
                %712 = sbr.rel (%p709) target = $region55
              $region52: #{tpu_custom_call.1} parent=47 // loop_body
                %v716 = vld [vmem:[%s714] sm:$0xff]
                %717 = vst [vmem:[%s715] sm:$0xff] %v716
                %v718 = vld [vmem:[%s714 + $0x8] sm:$0xff]
                %719 = vst [vmem:[%s715 + $0x8] sm:$0xff] %v718
                %v720 = vld [vmem:[%s714 + $0x10] sm:$0xff]
                %721 = vst [vmem:[%s715 + $0x10] sm:$0xff] %v720
                %v722 = vld [vmem:[%s714 + $0x18] sm:$0xff]
                %723 = vst [vmem:[%s715 + $0x18] sm:$0xff] %v722
                %v724 = vld [vmem:[%s714 + $0x20] sm:$0xff]
                %725 = vst [vmem:[%s715 + $0x20] sm:$0xff] %v724
                %v726 = vld [vmem:[%s714 + $0x28] sm:$0xff]
                %727 = vst [vmem:[%s715 + $0x28] sm:$0xff] %v726
                %v728 = vld [vmem:[%s714 + $0x30] sm:$0xff]
                %729 = vst [vmem:[%s715 + $0x30] sm:$0xff] %v728
                %v730 = vld [vmem:[%s714 + $0x38] sm:$0xff]
                %731 = vst [vmem:[%s715 + $0x38] sm:$0xff] %v730
                %v732 = vld [vmem:[%s714 + $0x40] sm:$0xff]
                %733 = vst [vmem:[%s715 + $0x40] sm:$0xff] %v732
                %v734 = vld [vmem:[%s714 + $0x48] sm:$0xff]
                %735 = vst [vmem:[%s715 + $0x48] sm:$0xff] %v734
                %v736 = vld [vmem:[%s714 + $0x50] sm:$0xff]
                %737 = vst [vmem:[%s715 + $0x50] sm:$0xff] %v736
                %v738 = vld [vmem:[%s714 + $0x58] sm:$0xff]
                %739 = vst [vmem:[%s715 + $0x58] sm:$0xff] %v738
                %v740 = vld [vmem:[%s714 + $0x60] sm:$0xff]
                %741 = vst [vmem:[%s715 + $0x60] sm:$0xff] %v740
                %v742 = vld [vmem:[%s714 + $0x68] sm:$0xff]
                %743 = vst [vmem:[%s715 + $0x68] sm:$0xff] %v742
                %v744 = vld [vmem:[%s714 + $0x70] sm:$0xff]
                %745 = vst [vmem:[%s715 + $0x70] sm:$0xff] %v744
                %v746 = vld [vmem:[%s714 + $0x78] sm:$0xff]
                %747 = vst [vmem:[%s715 + $0x78] sm:$0xff] %v746
                %s748 = sadd.s32 1, %s713
                %p749 = scmp.ge.s32.totalorder %s748, %s706
                %s750 = scalar_select %p749, 0, %s748
                %s751 = smul.u32 %s750, 128
                %s752 = smul.u32 %s750, 128
                %s753 = scalar_lea.vmem %s686, %s751 [#allocation2]
                %s754 = scalar_lea.vmem %s697, %s752
              $region53: #{tpu_custom_call.1} parent=47 // loop_footer
                %s710 = sadd.s32 %s708, 1
              $region54: #{tpu_custom_call.1} parent=47 // loop_footer_branch
                %707 = sbr.rel target = $region50
              $region55: #{tpu_custom_call.1} parent=47 // loop_exit
                _
              %s755 = sshrl.u32 %s693, 4
              %s756 = sand.u32 %s693, 15
              %s757 = smul.u32 %s755, 16
              %s758 = smul.u32 8, %s757
              %s759 = scalar_lea.vmem %s686, %s758 [#allocation2]
              %s760 = smul.u32 8, %s757
              %s761 = scalar_lea.vmem %s697, %s760
              // While loop
              $region56: #{tpu_custom_call.1} parent=47 // loop_pre_header
                _
              $region57: #{tpu_custom_call.1} parent=47 // loop_header
                %s763 = sphi 0, %s765
                %p764 = scmp.ge.s32.totalorder %s763, %s756
                %s768 = sphi 0, %s775
                %s769 = sphi %s759, %s778
                %s770 = sphi %s761, %s779
              $region58: #{tpu_custom_call.1} parent=47 // loop_header_branch
                %767 = sbr.rel (%p764) target = $region62
              $region59: #{tpu_custom_call.1} parent=47 // loop_body
                %v771 = vld [vmem:[%s769] sm:$0xff]
                %772 = vst [vmem:[%s770] sm:$0xff] %v771
                %s773 = sadd.s32 1, %s768
                %p774 = scmp.ge.s32.totalorder %s773, %s756
                %s775 = scalar_select %p774, 0, %s773
                %s776 = smul.u32 %s775, 8
                %s777 = smul.u32 %s775, 8
                %s778 = scalar_lea.vmem %s759, %s776 [#allocation2]
                %s779 = scalar_lea.vmem %s761, %s777
              $region60: #{tpu_custom_call.1} parent=47 // loop_footer
                %s765 = sadd.s32 %s763, 1
              $region61: #{tpu_custom_call.1} parent=47 // loop_footer_branch
                %762 = sbr.rel target = $region57
              $region62: #{tpu_custom_call.1} parent=47 // loop_exit
                _
            $region48: #{tpu_custom_call.1} parent=39 // pred_fallthru
              _
          $region40: #{tpu_custom_call.1} parent=35 // pred_fallthru
            _
          %858 = vnop
        $region36: #{tpu_custom_call.1} parent=31 // pred_fallthru
          _
      $region32: #{tpu_custom_call.1} parent=5 // pred_fallthru
        _
      %p859 = scmp.le.s32.totalorder 2, %s9
      // Predicated region
      $region85: #{tpu_custom_call.1} parent=5 // pred_check
        %p860 = pneg %p859
      $region86: #{tpu_custom_call.1} parent=5 // pred_check_branch
        %862 = sbr.rel (%p860) target = $region88
      $region87: #{tpu_custom_call.1} parent=5 // pred_region
        %s863 = ssub.s32 %s9, 2
        // Predicated region
        $region89: #{tpu_custom_call.1} parent=87 // pred_check
          %p864 = pneg %p106
        $region90: #{tpu_custom_call.1} parent=87 // pred_check_branch
          %866 = sbr.rel (%p864) target = $region92
        $region91: #{tpu_custom_call.1} parent=87 // pred_region
          %s867 = sand.u32 %s91, 1
          %s868 = sand.u32 %s91, 1
          %s869 = smul.addr %s868, 128
          %s870 = scalar_lea.vmem [#allocation2], %s869
        $region92: #{tpu_custom_call.1} parent=87 // pred_fallthru
          _
      $region88: #{tpu_custom_call.1} parent=5 // pred_fallthru
        _
    $region6: #{tpu_custom_call.1} parent=1 // loop_footer
      %s13 = sadd.s32 1, %s9
    $region7: #{tpu_custom_call.1} parent=1 // loop_footer_branch
      %8 = sbr.rel target = $region3
    $region8: #{tpu_custom_call.1} parent=1 // loop_exit
      _

</llo_original>
